<compile_context>
chip_gen: v7x
topology: tpu7x:2x2x1
jax: 0.10.0
libtpu: 0.0.40
codegen_flags: <defaults>
</compile_context>

<pallas_src>
import jax
import jax.numpy as jnp
import numpy as np
from jax.experimental import pallas as pl
from jax.experimental.pallas import tpu as pltpu


# ----------------------------------------------------------------------------
# Stage 1: norm_context + KV projection, once per batch, head-major outputs.
# ----------------------------------------------------------------------------
def _make_kv_kernel(num_heads, head_dim, matmul_dtype):
    H, dh = num_heads, head_dim

    def kernel(ctx_ref, g_ref, b_ref, wk_ref, bk_ref, wv_ref, bv_ref,
               k_ref, v_ref):
        ctx = ctx_ref[0]                                          # (N2, Dc) fp32
        mu = jnp.mean(ctx, axis=-1, keepdims=True)
        var = jnp.mean((ctx - mu) * (ctx - mu), axis=-1, keepdims=True)
        cn = (ctx - mu) * jax.lax.rsqrt(var + 1e-5) * g_ref[0] + b_ref[0]
        cm = cn.astype(matmul_dtype)
        k = jnp.dot(cm, wk_ref[...], preferred_element_type=jnp.float32) + bk_ref[0]
        v = jnp.dot(cm, wv_ref[...], preferred_element_type=jnp.float32) + bv_ref[0]
        # Head split happens ONCE per batch here (hoisted out of the q-tile grid),
        # so stage 2 reads K/V already head-major with zero per-tile relayout.
        for h in range(H):
            k_ref[0, h] = k[:, h * dh:(h + 1) * dh].astype(k_ref.dtype)
            v_ref[0, h] = v[:, h * dh:(h + 1) * dh].astype(v_ref.dtype)

    return kernel


# ----------------------------------------------------------------------------
# Stage 2: per (batch, q-tile) attention + output projection + MLP.
# ----------------------------------------------------------------------------
def _make_main_kernel(num_heads, head_dim, matmul_dtype, has_bias, approx_recip):
    H, dh = num_heads, head_dim

    def kernel(*refs):
        if has_bias:
            (x_ref, k_ref, v_ref, bias_ref,
             wq_ref, bq_ref, wo_ref, bo_ref,
             w1_ref, b1_ref, w2_ref, b2_ref, out_ref) = refs
        else:
            (x_ref, k_ref, v_ref,
             wq_ref, bq_ref, wo_ref, bo_ref,
             w1_ref, b1_ref, w2_ref, b2_ref, out_ref) = refs
            bias_ref = None

        x = x_ref[0]                                              # (TQ, D) fp32

        def ln(v, eps):
            mu = jnp.mean(v, axis=-1, keepdims=True)
            var = jnp.mean((v - mu) * (v - mu), axis=-1, keepdims=True)
            return (v - mu) * jax.lax.rsqrt(var + eps)

        def mm(a, b):   # MXU matmul, fp32 accumulation
            return jnp.dot(a.astype(matmul_dtype), b,
                           preferred_element_type=jnp.float32)

        # norm1 (no affine, eps=1e-6) + Q projection (scale pre-folded into Wq/bq).
        xn = ln(x, 1e-6)
        q = mm(xn, wq_ref[...]) + bq_ref[0]                       # (TQ, D) fp32
        qm = q.astype(matmul_dtype)

        # Head-major Q (H, TQ, dh): leading-batch layout so both attention matmuls
        # lower as native batched MXU dots (same einsum forms as the flash reference).
        q3 = jnp.stack([qm[:, h * dh:(h + 1) * dh] for h in range(H)], axis=0)
        k3 = k_ref[0]                                             # (H, N2, dh)
        v3 = v_ref[0]                                             # (H, N2, dh)

        sim = jnp.einsum("hqd,hkd->hqk", q3, k3,
                         preferred_element_type=jnp.float32)      # (H, TQ, N2)
        if bias_ref is not None:
            # compact bias: (TQ,1) query-mask or (1,N2) key-mask, broadcast in-VREG.
            sim = sim + bias_ref[0]
        sim = sim - jnp.max(sim, axis=-1, keepdims=True)
        p = jnp.exp(sim)
        denom = jnp.sum(p, axis=-1, keepdims=True)
        if approx_recip:
            attn = p * pl.reciprocal(denom, approx=True)          # EUP slot, ~free
        else:
            attn = p / denom
        o3 = jnp.einsum("hqk,hkd->hqd", attn.astype(matmul_dtype), v3,
                        preferred_element_type=jnp.float32)       # (H, TQ, dh)

        # Merge heads back to (TQ, D) in-register (no VMEM scratch round-trip),
        # then ONE full-width (K = D) output projection.
        o_cat = jnp.concatenate([o3[h] for h in range(H)], axis=-1)
        attn_out = mm(o_cat, wo_ref[...]) + bo_ref[0]

        x1 = x + attn_out                                         # residual 1

        # norm2 + MLP (tanh-approximate GELU) + residual 2
        x2 = ln(x1, 1e-6)
        h1 = mm(x2, w1_ref[...]) + b1_ref[0]                      # (TQ, M)
        c = jnp.float32(0.7978845608028654)                       # sqrt(2/pi)
        g = 0.5 * h1 * (1.0 + jnp.tanh(c * (h1 + 0.044715 * h1 * h1 * h1)))
        h2 = mm(g, w2_ref[...]) + b2_ref[0]                       # (TQ, D)

        out_ref[0] = (x1 + h2).astype(out_ref.dtype)

    return kernel


def _vmem_limit_bytes(q_tile, N2, D, M, H, dh, w_itemsize, has_bias):
    """Per-step VMEM footprint (weights double-buffered by default) + headroom."""
    f32 = 4
    weights = 2 * ((2 * D * D + D * M + M * D) * w_itemsize + (3 * D + M) * f32)
    tiles = 2 * (2 * q_tile * D * f32                     # x tile + out tile
                 + 2 * H * N2 * dh * w_itemsize           # K, V tiles
                 + ((q_tile + N2) * f32 if has_bias else 0))
    interm = (2 * H * q_tile * N2 * f32                   # sim + probs
              + q_tile * M * f32                          # MLP hidden
              + 4 * q_tile * D * f32)                     # q / o_cat / x1 / x2
    est = int(1.25 * (weights + tiles + interm)) + (2 << 20)
    # floor >= every generation's scoped default; cap <= physical VMEM on v7x.
    return max(32 << 20, min(est, 64 << 20))


# ----------------------------------------------------------------------------
# Wrapper: parameter plumbing, compact mask bias, padding, two pallas_calls.
# ----------------------------------------------------------------------------
def cross_attn_block(x, context, params, num_heads, mask=None, *,
                     q_tile=None, matmul_dtype=jnp.bfloat16,
                     out_dtype=None, approx_softmax_recip=True):
    x = x.astype(jnp.float32)
    context = context.astype(jnp.float32)
    B, N1, D = x.shape
    _, N2, Dc = context.shape
    H = num_heads
    assert D % H == 0
    dh = D // H
    M = params["w1"].shape[1]
    out_dtype = jnp.float32 if out_dtype is None else out_dtype

    # Query tile: 128 fills an MXU pass on v5e; raise to 256 on v6e/v7x if the
    # VMEM budget allows (see _vmem_limit_bytes).
    if q_tile is None:
        q_tile = N1 if N1 <= 128 else 128
    n_q = pl.cdiv(N1, q_tile)
    N1p = n_q * q_tile

    f32 = jnp.float32
    scale = float(dh) ** -0.5
    # Fold attention scale into the Q projection (host-side, free).
    wq = params["wq"].astype(f32) * scale
    bq = params["bq"].astype(f32) * scale
    wkv = params["wkv"].astype(f32)
    bkv = params["bkv"].astype(f32)
    wk, wv = wkv[:, :D], wkv[:, D:]
    bk, bv = bkv[:, :D], bkv[:, D:]
    wo, bo = params["wo"].astype(f32), params["bo"].astype(f32)
    w1, b1 = params["w1"].astype(f32), params["b1"].astype(f32)
    w2, b2 = params["w2"].astype(f32), params["b2"].astype(f32)
    gctx = params["gamma_ctx"].astype(f32)
    bctx = params["beta_ctx"].astype(f32)
    if matmul_dtype == jnp.bfloat16:
        # Halve weight DMA/VMEM; biases and LayerNorm affine stay fp32.
        wq, wk, wv, wo, w1, w2 = (w.astype(jnp.bfloat16)
                                  for w in (wq, wk, wv, wo, w1, w2))

    # ---- stage 1: context LayerNorm + KV projection, once per batch ----
    const1 = lambda b: (0, 0)
    k_arr, v_arr = pl.pallas_call(
        _make_kv_kernel(H, dh, matmul_dtype),
        out_shape=(jax.ShapeDtypeStruct((B, H, N2, dh), matmul_dtype),
                   jax.ShapeDtypeStruct((B, H, N2, dh), matmul_dtype)),
        grid=(B,),
        in_specs=[
            pl.BlockSpec((1, N2, Dc), lambda b: (b, 0, 0)),   # context
            pl.BlockSpec((1, Dc), const1),                    # gamma_ctx
            pl.BlockSpec((1, Dc), const1),                    # beta_ctx
            pl.BlockSpec((Dc, D), const1),                    # Wk
            pl.BlockSpec((1, D), const1),                     # bk
            pl.BlockSpec((Dc, D), const1),                    # Wv
            pl.BlockSpec((1, D), const1),                     # bv
        ],
        out_specs=(pl.BlockSpec((1, H, N2, dh), lambda b: (b, 0, 0, 0)),
                   pl.BlockSpec((1, H, N2, dh), lambda b: (b, 0, 0, 0))),
        compiler_params=pltpu.CompilerParams(dimension_semantics=("parallel",)),
    )(context, gctx, bctx, wk, bk, wv, bv)

    # ---- compact mask bias (no (B, N1, N2) materialization) ----
    has_bias = mask is not None
    bias, bias_spec = None, None
    if has_bias:
        max_neg = -float(jnp.finfo(jnp.float32).max)
        # NOTE: mask.shape[1]==N1 is ambiguous when N1==N2 (query-mask wins),
        # matching the original PyTorch module.
        if mask.shape[1] == N1:      # query mask -> (B, N1, 1) additive bias
            bias = jnp.where(mask, 0.0, max_neg).astype(f32)[:, :, None]
            if N1p != N1:
                bias = jnp.pad(bias, ((0, 0), (0, N1p - N1), (0, 0)))
            bias_spec = pl.BlockSpec((1, q_tile, 1), lambda b, qi: (b, qi, 0))
        else:                        # key mask -> (B, 1, N2) additive bias
            bias = jnp.where(mask, 0.0, max_neg).astype(f32)[:, None, :]
            bias_spec = pl.BlockSpec((1, 1, N2), lambda b, qi: (b, 0, 0))

    xp = x if N1p == N1 else jnp.pad(x, ((0, 0), (0, N1p - N1), (0, 0)))

    # ---- stage 2: attention + MLP, per (batch, q-tile) ----
    const = lambda b, qi: (0, 0)
    in_specs = [
        pl.BlockSpec((1, q_tile, D), lambda b, qi: (b, qi, 0)),     # x tile
        pl.BlockSpec((1, H, N2, dh), lambda b, qi: (b, 0, 0, 0)),   # K (head-major)
        pl.BlockSpec((1, H, N2, dh), lambda b, qi: (b, 0, 0, 0)),   # V (head-major)
    ]
    inputs = [xp, k_arr, v_arr]
    if has_bias:
        in_specs.append(bias_spec)
        inputs.append(bias)
    in_specs += [
        pl.BlockSpec((D, D), const),    # Wq (pre-scaled)
        pl.BlockSpec((1, D), const),    # bq (pre-scaled)
        pl.BlockSpec((D, D), const),    # Wo
        pl.BlockSpec((1, D), const),    # bo
        pl.BlockSpec((D, M), const),    # W1
        pl.BlockSpec((1, M), const),    # b1
        pl.BlockSpec((M, D), const),    # W2
        pl.BlockSpec((1, D), const),    # b2
    ]
    inputs += [wq, bq, wo, bo, w1, b1, w2, b2]

    w_itemsize = 2 if matmul_dtype == jnp.bfloat16 else 4
    vmem_limit = _vmem_limit_bytes(q_tile, N2, D, M, H, dh, w_itemsize, has_bias)

    out = pl.pallas_call(
        _make_main_kernel(H, dh, matmul_dtype, has_bias, approx_softmax_recip),
        out_shape=jax.ShapeDtypeStruct((B, N1p, D), out_dtype),
        grid=(B, n_q),
        in_specs=in_specs,
        out_specs=pl.BlockSpec((1, q_tile, D), lambda b, qi: (b, qi, 0)),
        compiler_params=pltpu.CompilerParams(
            dimension_semantics=("parallel", "parallel"),
            vmem_limit_bytes=vmem_limit),
    )(*inputs)

    return out if N1p == N1 else out[:, :N1]


# ----------------------------------------------------------------------------
# Pure-JAX reference (mirrors the PyTorch module) for validation.
# ----------------------------------------------------------------------------
def reference(x, context, params, num_heads, mask=None):
    B, N1, D = x.shape
    N2 = context.shape[1]
    H = num_heads
    dh = D // H

    def ln(v, eps):
        mu = jnp.mean(v, -1, keepdims=True)
        var = jnp.mean((v - mu) ** 2, -1, keepdims=True)
        return (v - mu) / jnp.sqrt(var + eps)

    xn = ln(x, 1e-6)
    cn = ln(context, 1e-5) * params["gamma_ctx"][0] + params["beta_ctx"][0]

    q = xn @ params["wq"] + params["bq"][0]
    kv = cn @ params["wkv"] + params["bkv"][0]
    k, v = kv[..., :D], kv[..., D:]

    q = q.reshape(B, N1, H, dh).transpose(0, 2, 1, 3)
    k = k.reshape(B, N2, H, dh).transpose(0, 2, 1, 3)
    v = v.reshape(B, N2, H, dh).transpose(0, 2, 1, 3)

    sim = jnp.einsum("bhqd,bhkd->bhqk", q, k) * (dh ** -0.5)
    if mask is not None:
        max_neg = -jnp.finfo(x.dtype).max
        if mask.shape[1] == N1:
            m = jnp.broadcast_to(mask[:, None, :, None], (B, H, N1, N2))
        else:
            m = jnp.broadcast_to(mask[:, None, None, :], (B, H, N1, N2))
        sim = sim + jnp.where(m, 0.0, max_neg)
    attn = jax.nn.softmax(sim, axis=-1)
    o = jnp.einsum("bhqk,bhkd->bhqd", attn, v).transpose(0, 2, 1, 3).reshape(B, N1, D)
    o = o @ params["wo"] + params["bo"][0]
    x = x + o

    x2 = ln(x, 1e-6)
    h1 = x2 @ params["w1"] + params["b1"][0]
    c = 0.7978845608028654
    g = 0.5 * h1 * (1.0 + jnp.tanh(c * (h1 + 0.044715 * h1 ** 3)))
    h2 = g @ params["w2"] + params["b2"][0]
    return x + h2


# ----------------------------------------------------------------------------
# Deterministic parameter init + run.
# ----------------------------------------------------------------------------
def init_params(key, hidden, context_dim, mlp_hidden):
    ks = jax.random.split(key, 12)
    s = 0.05
    return {
        # norm_context affine (LayerNorm(hidden_size)); context_dim == hidden here.
        "gamma_ctx": 1.0 + s * jax.random.normal(ks[0], (1, hidden), jnp.float32),
        "beta_ctx": s * jax.random.normal(ks[1], (1, hidden), jnp.float32),
        # attention projections (stored transposed: in x out)
        "wq": s * jax.random.normal(ks[2], (hidden, hidden), jnp.float32),
        "bq": s * jax.random.normal(ks[3], (1, hidden), jnp.float32),
        "wkv": s * jax.random.normal(ks[4], (context_dim, 2 * hidden), jnp.float32),
        "bkv": s * jax.random.normal(ks[5], (1, 2 * hidden), jnp.float32),
        "wo": s * jax.random.normal(ks[6], (hidden, hidden), jnp.float32),
        "bo": s * jax.random.normal(ks[7], (1, hidden), jnp.float32),
        # mlp
        "w1": s * jax.random.normal(ks[8], (hidden, mlp_hidden), jnp.float32),
        "b1": s * jax.random.normal(ks[9], (1, mlp_hidden), jnp.float32),
        "w2": s * jax.random.normal(ks[10], (mlp_hidden, hidden), jnp.float32),
        "b2": s * jax.random.normal(ks[11], (1, hidden), jnp.float32),
    }


if __name__ == "__main__":
    B, N1, N2 = 2, 16, 8
    hidden = 32
    num_heads = 2
    mlp_ratio = 4.0
    context_dim = hidden          # norm_context = LayerNorm(hidden) requires this
    mlp_hidden = int(hidden * mlp_ratio)

    key = jax.random.PRNGKey(0)
    kx, kc, kp, km, kq = jax.random.split(key, 5)
    x = jax.random.normal(kx, (B, N1, hidden), jnp.float32)
    context = jax.random.normal(kc, (B, N2, context_dim), jnp.float32)
    params = init_params(kp, hidden, context_dim, mlp_hidden)
    ref = reference(x, context, params, num_heads, mask=None)

    # fp32 matmuls, exact softmax reciprocal, tiled query axis (grid = (B, N1//8)).
    # (tolerance leaves slack for the MXU's internal fp32-matmul decomposition)
    out = cross_attn_block(x, context, params, num_heads, mask=None, q_tile=8,
                           matmul_dtype=jnp.float32, approx_softmax_recip=False)
    out = jax.block_until_ready(out)
    np.testing.assert_allclose(np.asarray(out), np.asarray(ref), rtol=2e-3, atol=2e-3)

    # key mask (B, N2): compact (B, 1, N2) additive bias, broadcast over heads/queries.
    mask_k = jax.random.bernoulli(km, 0.7, (B, N2))
    out_k = cross_attn_block(x, context, params, num_heads, mask=mask_k, q_tile=8,
                             matmul_dtype=jnp.float32, approx_softmax_recip=False)
    out_k = jax.block_until_ready(out_k)
    ref_k = reference(x, context, params, num_heads, mask=mask_k)
    np.testing.assert_allclose(np.asarray(out_k), np.asarray(ref_k), rtol=2e-3, atol=2e-3)

    # query mask (B, N1): compact (B, N1, 1) additive bias, broadcast over heads/keys.
    mask_q = jax.random.bernoulli(kq, 0.7, (B, N1))
    out_q = cross_attn_block(x, context, params, num_heads, mask=mask_q, q_tile=8,
                             matmul_dtype=jnp.float32, approx_softmax_recip=False)
    out_q = jax.block_until_ready(out_q)
    ref_q = reference(x, context, params, num_heads, mask=mask_q)
    np.testing.assert_allclose(np.asarray(out_q), np.asarray(ref_q), rtol=2e-3, atol=2e-3)

    # default path: bf16 matmuls (fp32 accumulation) + approx softmax reciprocal.
    out_bf = cross_attn_block(x, context, params, num_heads, mask=None, q_tile=8)
    out_bf = jax.block_until_ready(out_bf)
    np.testing.assert_allclose(np.asarray(out_bf), np.asarray(ref), rtol=5e-2, atol=5e-2)

    print("KERNEL_OK")
</pallas_src>

<mosaic_0001>
module attributes {stable_mosaic.version = 11 : i64} {
  func.func @kernel(%arg0: i32, %arg1: memref<1x8x32xf32, #tpu.memory_space<vmem>>, %arg2: memref<1x32xf32, #tpu.memory_space<vmem>>, %arg3: memref<1x32xf32, #tpu.memory_space<vmem>>, %arg4: memref<32x32xf32, #tpu.memory_space<vmem>>, %arg5: memref<1x32xf32, #tpu.memory_space<vmem>>, %arg6: memref<32x32xf32, #tpu.memory_space<vmem>>, %arg7: memref<1x32xf32, #tpu.memory_space<vmem>>, %arg8: memref<1x2x8x16xf32, #tpu.memory_space<vmem>>, %arg9: memref<1x2x8x16xf32, #tpu.memory_space<vmem>>) attributes {dimension_semantics = [#tpu.dimension_semantics<parallel>], iteration_bounds = array<i64: 2>, scalar_prefetch = 0 : i64, scratch_operands = 0 : i64, tpu.core_type = #tpu.core_type<tc>, window_params = [{transform_indices = @transform_0, window_bounds = array<i64: 1, 8, 32>}, {pipeline_mode = #tpu.pipeline_mode<synchronous>, transform_indices = @transform_1, window_bounds = array<i64: 1, 32>}, {pipeline_mode = #tpu.pipeline_mode<synchronous>, transform_indices = @transform_2, window_bounds = array<i64: 1, 32>}, {pipeline_mode = #tpu.pipeline_mode<synchronous>, transform_indices = @transform_3, window_bounds = array<i64: 32, 32>}, {pipeline_mode = #tpu.pipeline_mode<synchronous>, transform_indices = @transform_4, window_bounds = array<i64: 1, 32>}, {pipeline_mode = #tpu.pipeline_mode<synchronous>, transform_indices = @transform_5, window_bounds = array<i64: 32, 32>}, {pipeline_mode = #tpu.pipeline_mode<synchronous>, transform_indices = @transform_6, window_bounds = array<i64: 1, 32>}, {transform_indices = @transform_7, window_bounds = array<i64: 1, 2, 8, 16>}, {transform_indices = @transform_8, window_bounds = array<i64: 1, 2, 8, 16>}]} {
    %c0 = arith.constant 0 : index
    %c0_0 = arith.constant 0 : index
    %c0_1 = arith.constant 0 : index
    %0 = vector.load %arg1[%c0, %c0_0, %c0_1] : memref<1x8x32xf32, #tpu.memory_space<vmem>>, vector<1x8x32xf32>
    %1 = vector.shape_cast %0 : vector<1x8x32xf32> to vector<8x32xf32>
    %cst = arith.constant dense<0.000000e+00> : vector<8xf32>
    %2 = vector.multi_reduction <add>, %1, %cst [1] : vector<8x32xf32> to vector<8xf32>
    %3 = vector.shape_cast %2 : vector<8xf32> to vector<8x1xf32>
    %cst_2 = arith.constant 3.200000e+01 : f32
    %4 = vector.broadcast %cst_2 : f32 to vector<8x1xf32>
    %5 = arith.divf %3, %4 : vector<8x1xf32>
    %6 = vector.broadcast %5 : vector<8x1xf32> to vector<8x32xf32>
    %7 = arith.subf %1, %6 : vector<8x32xf32>
    %8 = vector.broadcast %5 : vector<8x1xf32> to vector<8x32xf32>
    %9 = arith.subf %1, %8 : vector<8x32xf32>
    %10 = arith.mulf %7, %9 : vector<8x32xf32>
    %cst_3 = arith.constant dense<0.000000e+00> : vector<8xf32>
    %11 = vector.multi_reduction <add>, %10, %cst_3 [1] : vector<8x32xf32> to vector<8xf32>
    %12 = vector.shape_cast %11 : vector<8xf32> to vector<8x1xf32>
    %cst_4 = arith.constant 3.200000e+01 : f32
    %13 = vector.broadcast %cst_4 : f32 to vector<8x1xf32>
    %14 = arith.divf %12, %13 : vector<8x1xf32>
    %15 = vector.broadcast %5 : vector<8x1xf32> to vector<8x32xf32>
    %16 = arith.subf %1, %15 : vector<8x32xf32>
    %cst_5 = arith.constant 9.99999974E-6 : f32
    %17 = vector.broadcast %cst_5 : f32 to vector<8x1xf32>
    %18 = arith.addf %14, %17 : vector<8x1xf32>
    %19 = math.rsqrt %18 : vector<8x1xf32>
    %20 = vector.broadcast %19 : vector<8x1xf32> to vector<8x32xf32>
    %21 = arith.mulf %16, %20 : vector<8x32xf32>
    %c0_6 = arith.constant 0 : index
    %c0_7 = arith.constant 0 : index
    %22 = vector.load %arg2[%c0_6, %c0_7] : memref<1x32xf32, #tpu.memory_space<vmem>>, vector<1x32xf32>
    %23 = vector.shape_cast %22 : vector<1x32xf32> to vector<32xf32>
    %24 = vector.shape_cast %23 : vector<32xf32> to vector<1x32xf32>
    %25 = vector.broadcast %24 : vector<1x32xf32> to vector<8x32xf32>
    %26 = arith.mulf %21, %25 : vector<8x32xf32>
    %c0_8 = arith.constant 0 : index
    %c0_9 = arith.constant 0 : index
    %27 = vector.load %arg3[%c0_8, %c0_9] : memref<1x32xf32, #tpu.memory_space<vmem>>, vector<1x32xf32>
    %28 = vector.shape_cast %27 : vector<1x32xf32> to vector<32xf32>
    %29 = vector.shape_cast %28 : vector<32xf32> to vector<1x32xf32>
    %30 = vector.broadcast %29 : vector<1x32xf32> to vector<8x32xf32>
    %31 = arith.addf %26, %30 : vector<8x32xf32>
    %c0_10 = arith.constant 0 : index
    %c0_11 = arith.constant 0 : index
    %32 = vector.load %arg4[%c0_10, %c0_11] : memref<32x32xf32, #tpu.memory_space<vmem>>, vector<32x32xf32>
    %cst_12 = arith.constant dense<0.000000e+00> : vector<8x32xf32>
    %33 = tpu.matmul %31, %32, %cst_12 {dimension_numbers = #tpu.dot_dimension_numbers<[1], [0], [0], [1], [0, 0, 1, 1], [], []>} : vector<8x32xf32>, vector<32x32xf32>, vector<8x32xf32> -> vector<8x32xf32>
    %c0_13 = arith.constant 0 : index
    %c0_14 = arith.constant 0 : index
    %34 = vector.load %arg5[%c0_13, %c0_14] : memref<1x32xf32, #tpu.memory_space<vmem>>, vector<1x32xf32>
    %35 = vector.shape_cast %34 : vector<1x32xf32> to vector<32xf32>
    %36 = vector.shape_cast %35 : vector<32xf32> to vector<1x32xf32>
    %37 = vector.broadcast %36 : vector<1x32xf32> to vector<8x32xf32>
    %38 = arith.addf %33, %37 : vector<8x32xf32>
    %c0_15 = arith.constant 0 : index
    %c0_16 = arith.constant 0 : index
    %39 = vector.load %arg6[%c0_15, %c0_16] : memref<32x32xf32, #tpu.memory_space<vmem>>, vector<32x32xf32>
    %cst_17 = arith.constant dense<0.000000e+00> : vector<8x32xf32>
    %40 = tpu.matmul %31, %39, %cst_17 {dimension_numbers = #tpu.dot_dimension_numbers<[1], [0], [0], [1], [0, 0, 1, 1], [], []>} : vector<8x32xf32>, vector<32x32xf32>, vector<8x32xf32> -> vector<8x32xf32>
    %c0_18 = arith.constant 0 : index
    %c0_19 = arith.constant 0 : index
    %41 = vector.load %arg7[%c0_18, %c0_19] : memref<1x32xf32, #tpu.memory_space<vmem>>, vector<1x32xf32>
    %42 = vector.shape_cast %41 : vector<1x32xf32> to vector<32xf32>
    %43 = vector.shape_cast %42 : vector<32xf32> to vector<1x32xf32>
    %44 = vector.broadcast %43 : vector<1x32xf32> to vector<8x32xf32>
    %45 = arith.addf %40, %44 : vector<8x32xf32>
    %46 = vector.extract_strided_slice %38 {offsets = [0, 0], sizes = [8, 16], strides = [1, 1]} : vector<8x32xf32> to vector<8x16xf32>
    %c0_20 = arith.constant 0 : index
    %c0_21 = arith.constant 0 : index
    %c0_22 = arith.constant 0 : index
    %c0_23 = arith.constant 0 : index
    %47 = vector.load %arg8[%c0_20, %c0_21, %c0_22, %c0_23] : memref<1x2x8x16xf32, #tpu.memory_space<vmem>>, vector<1x1x8x16xf32>
    %48 = vector.shape_cast %47 : vector<1x1x8x16xf32> to vector<8x16xf32>
    %49 = vector.shape_cast %46 : vector<8x16xf32> to vector<1x1x8x16xf32>
    tpu.vector_store %arg8[%c0_20, %c0_21, %c0_22, %c0_23], %49 {strides = array<i32>} : memref<1x2x8x16xf32, #tpu.memory_space<vmem>>, vector<1x1x8x16xf32>,
    %50 = vector.extract_strided_slice %45 {offsets = [0, 0], sizes = [8, 16], strides = [1, 1]} : vector<8x32xf32> to vector<8x16xf32>
    %c0_24 = arith.constant 0 : index
    %c0_25 = arith.constant 0 : index
    %c0_26 = arith.constant 0 : index
    %c0_27 = arith.constant 0 : index
    %51 = vector.load %arg9[%c0_24, %c0_25, %c0_26, %c0_27] : memref<1x2x8x16xf32, #tpu.memory_space<vmem>>, vector<1x1x8x16xf32>
    %52 = vector.shape_cast %51 : vector<1x1x8x16xf32> to vector<8x16xf32>
    %53 = vector.shape_cast %50 : vector<8x16xf32> to vector<1x1x8x16xf32>
    tpu.vector_store %arg9[%c0_24, %c0_25, %c0_26, %c0_27], %53 {strides = array<i32>} : memref<1x2x8x16xf32, #tpu.memory_space<vmem>>, vector<1x1x8x16xf32>,
    %54 = vector.extract_strided_slice %38 {offsets = [0, 16], sizes = [8, 16], strides = [1, 1]} : vector<8x32xf32> to vector<8x16xf32>
    %c0_28 = arith.constant 0 : index
    %c1 = arith.constant 1 : index
    %c0_29 = arith.constant 0 : index
    %c0_30 = arith.constant 0 : index
    %55 = vector.load %arg8[%c0_28, %c1, %c0_29, %c0_30] : memref<1x2x8x16xf32, #tpu.memory_space<vmem>>, vector<1x1x8x16xf32>
    %56 = vector.shape_cast %55 : vector<1x1x8x16xf32> to vector<8x16xf32>
    %57 = vector.shape_cast %54 : vector<8x16xf32> to vector<1x1x8x16xf32>
    tpu.vector_store %arg8[%c0_28, %c1, %c0_29, %c0_30], %57 {strides = array<i32>} : memref<1x2x8x16xf32, #tpu.memory_space<vmem>>, vector<1x1x8x16xf32>,
    %58 = vector.extract_strided_slice %45 {offsets = [0, 16], sizes = [8, 16], strides = [1, 1]} : vector<8x32xf32> to vector<8x16xf32>
    %c0_31 = arith.constant 0 : index
    %c1_32 = arith.constant 1 : index
    %c0_33 = arith.constant 0 : index
    %c0_34 = arith.constant 0 : index
    %59 = vector.load %arg9[%c0_31, %c1_32, %c0_33, %c0_34] : memref<1x2x8x16xf32, #tpu.memory_space<vmem>>, vector<1x1x8x16xf32>
    %60 = vector.shape_cast %59 : vector<1x1x8x16xf32> to vector<8x16xf32>
    %61 = vector.shape_cast %58 : vector<8x16xf32> to vector<1x1x8x16xf32>
    tpu.vector_store %arg9[%c0_31, %c1_32, %c0_33, %c0_34], %61 {strides = array<i32>} : memref<1x2x8x16xf32, #tpu.memory_space<vmem>>, vector<1x1x8x16xf32>,
    return
  }
  func.func @transform_0(%arg0: i32) -> (i32, i32, i32) {
    %c0_i32 = arith.constant 0 : i32
    %c0_i32_0 = arith.constant 0 : i32
    %c0_i32_1 = arith.constant 0 : i32
    return %arg0, %c0_i32, %c0_i32_0 : i32, i32, i32
  }
  func.func @transform_1(%arg0: i32) -> (i32, i32) {
    %c0_i32 = arith.constant 0 : i32
    %c0_i32_0 = arith.constant 0 : i32
    %c0_i32_1 = arith.constant 0 : i32
    return %c0_i32, %c0_i32_0 : i32, i32
  }
  func.func @transform_2(%arg0: i32) -> (i32, i32) {
    %c0_i32 = arith.constant 0 : i32
    %c0_i32_0 = arith.constant 0 : i32
    %c0_i32_1 = arith.constant 0 : i32
    return %c0_i32, %c0_i32_0 : i32, i32
  }
  func.func @transform_3(%arg0: i32) -> (i32, i32) {
    %c0_i32 = arith.constant 0 : i32
    %c0_i32_0 = arith.constant 0 : i32
    %c0_i32_1 = arith.constant 0 : i32
    return %c0_i32, %c0_i32_0 : i32, i32
  }
  func.func @transform_4(%arg0: i32) -> (i32, i32) {
    %c0_i32 = arith.constant 0 : i32
    %c0_i32_0 = arith.constant 0 : i32
    %c0_i32_1 = arith.constant 0 : i32
    return %c0_i32, %c0_i32_0 : i32, i32
  }
  func.func @transform_5(%arg0: i32) -> (i32, i32) {
    %c0_i32 = arith.constant 0 : i32
    %c0_i32_0 = arith.constant 0 : i32
    %c0_i32_1 = arith.constant 0 : i32
    return %c0_i32, %c0_i32_0 : i32, i32
  }
  func.func @transform_6(%arg0: i32) -> (i32, i32) {
    %c0_i32 = arith.constant 0 : i32
    %c0_i32_0 = arith.constant 0 : i32
    %c0_i32_1 = arith.constant 0 : i32
    return %c0_i32, %c0_i32_0 : i32, i32
  }
  func.func @transform_7(%arg0: i32) -> (i32, i32, i32, i32) {
    %c0_i32 = arith.constant 0 : i32
    %c0_i32_0 = arith.constant 0 : i32
    %c0_i32_1 = arith.constant 0 : i32
    %c0_i32_2 = arith.constant 0 : i32
    return %arg0, %c0_i32, %c0_i32_0, %c0_i32_1 : i32, i32, i32, i32
  }
  func.func @transform_8(%arg0: i32) -> (i32, i32, i32, i32) {
    %c0_i32 = arith.constant 0 : i32
    %c0_i32_0 = arith.constant 0 : i32
    %c0_i32_1 = arith.constant 0 : i32
    %c0_i32_2 = arith.constant 0 : i32
    return %arg0, %c0_i32, %c0_i32_0, %c0_i32_1 : i32, i32, i32, i32
  }
}

</mosaic_0001>

<llo_original>
// kernel: tpu_custom_call.1
$region0: #{tpu_custom_call.1}
  #allocation0 [shape = 'u32[]', space=smem, size = 0x4, offset = 0x4, fixed_abs, tag = 'smem constant byte address 0x4 - core index']
  #allocation1 [shape = 'u32[144,128]{1,0:T(1,128)}', space=vmem, size = 0x12000, scoped, tag = 'internal scratch']
  %s0 = inlined_call_operand.hbm [shape: f32[2,8,32], index: 0, kind: input, shape index: {}]
  %s1 = inlined_call_operand.vmem [shape: f32[1,32], index: 1, kind: input, shape index: {}]
  %s2 = inlined_call_operand.vmem [shape: f32[1,32], index: 2, kind: input, shape index: {}]
  %s3 = inlined_call_operand.hbm [shape: f32[32,32], index: 3, kind: input, shape index: {}]
  %s4 = inlined_call_operand.vmem [shape: f32[1,32], index: 4, kind: input, shape index: {}]
  %s5 = inlined_call_operand.hbm [shape: f32[32,32], index: 5, kind: input, shape index: {}]
  %s6 = inlined_call_operand.vmem [shape: f32[1,32], index: 6, kind: input, shape index: {}]
  %s7 = inlined_call_operand.hbm [shape: f32[2,2,8,16], index: 7, kind: output, shape index: {0}]
  %s8 = inlined_call_operand.hbm [shape: f32[2,2,8,16], index: 8, kind: output, shape index: {1}]
  %9 = xla_tuple %s7, %s8
  %s10 = sld [smem:[#allocation0]]
  $region81: #{tpu_custom_call.1} parent=0
    _
  %s12 = ssub.s32 1, %s10
  %s13 = scalar_select 0, %s12, %s10
  $region1: #{tpu_custom_call.1} parent=0
    #allocation2 [shape = 'u8[8192]{0}', space=vmem, size = 0x2000, scoped, tag = 'input window, operand 0']
    #allocation3 [shape = 's32[2]{0}', space=sflag, size = 0x8, scoped, tag = 'scoped memory for tpu_custom_call.1']
    #allocation4 [shape = 's32[2]{0}', space=sflag, size = 0x8, scoped, tag = 'scoped memory for tpu_custom_call.1']
    #allocation5 [shape = 'u8[16384]{0}', space=vmem, size = 0x4000, scoped, tag = 'input window, operand 3, single buffered']
    #allocation6 [shape = 's32[1]{0}', space=sflag, size = 0x4, scoped, tag = 'scoped memory for tpu_custom_call.1']
    #allocation7 [shape = 'u8[16384]{0}', space=vmem, size = 0x4000, scoped, tag = 'input window, operand 5, single buffered']
    #allocation8 [shape = 'u8[16384]{0}', space=vmem, size = 0x4000, scoped, tag = 'output window, operand 0']
    #allocation9 [shape = 'u8[16384]{0}', space=vmem, size = 0x4000, scoped, tag = 'output window, operand 1']
    #allocation10 [shape = 's32[2]{0}', space=sflag, size = 0x8, scoped, tag = 'scoped memory for tpu_custom_call.1']
    %14 = vsyncpa [#allocation3], 0
    %s15 = scalar_lea.sflag [#allocation3], 1
    %16 = vsyncpa %s15, 0
    %17 = vsyncpa [#allocation6], 0
    %18 = vsyncpa [#allocation4], 0
    %s19 = scalar_lea.sflag [#allocation4], 1
    %20 = vsyncpa %s19, 0
    %21 = vsyncpa [#allocation10], 0
    %s22 = scalar_lea.sflag [#allocation10], 1
    %23 = vsyncpa %s22, 0
    loop: start=0, step=1, limit=4
    $region2: #{tpu_custom_call.1} parent=1 // loop_pre_header
      _
    $region3: #{tpu_custom_call.1} parent=1 // loop_header
      %s25 = sphi 0, %s29
      %p26 = scmp.ge.s32.totalorder %s25, 4
      %s35 = sphi 0, %s37
      %s38 = sphi 0, %s35
      %s39 = sphi 0, %s38
      %s55 = sphi 0, %s39
      %s59 = sphi 0, %s59
      %s61 = sphi 0, %s59
      %s62 = sphi 0, %s61
      %s76 = sphi 0, %s62
      %s80 = sphi 0, %s80
      %s82 = sphi 0, %s80
      %s83 = sphi 0, %s82
      %s97 = sphi 0, %s83
      %s101 = sphi 0, %s101
      %s103 = sphi 0, %s101
      %s104 = sphi 0, %s103
      %s118 = sphi 0, %s104
      %s122 = sphi 0, %s122
      %s124 = sphi 0, %s122
      %s125 = sphi 0, %s124
      %s139 = sphi 0, %s125
      %s143 = sphi 0, %s143
      %s145 = sphi 0, %s143
      %s146 = sphi 0, %s145
      %s160 = sphi 0, %s146
      %s164 = sphi 0, %s164
      %s166 = sphi 0, %s164
      %s167 = sphi 0, %s166
      %s181 = sphi 0, %s167
      %s187 = sphi 0, %s189
      %s190 = sphi 0, %s187
      %s191 = sphi 0, %s190
      %s207 = sphi 0, %s191
      %s213 = sphi 0, %s215
      %s216 = sphi 0, %s213
      %s217 = sphi 0, %s216
      %s233 = sphi 0, %s217
    $region4: #{tpu_custom_call.1} parent=1 // loop_header_branch
      %28 = sbr.rel (%p26) target = $region8
    $region5: #{tpu_custom_call.1} parent=1 // loop_body
      %s30 = ssub.s32 %s25, 1
      %s31 = ssub.s32 %s25, 2
      %s32 = sadd.s32 %s25, 1
      %s33 = ssub.s32 %s25, %s32
      %p34 = scmp.eq.s32.totalorder %s33, 0
      %s36 = sadd.s32 %s35, 1
      %s37 = scalar_select %p34, %s35, %s36
      %p40 = pneg %p34
      %p41 = scmp.eq.s32.totalorder %s25, 1
      %p42 = por %p40, %p41
      %p43 = scmp.ne.s32.totalorder %s35, %s38
      %p44 = scmp.eq.s32.totalorder %s25, 0
      %p45 = por %p43, %p44
      %p46 = scmp.ne.s32.totalorder %s35, %s38
      %p47 = scmp.eq.s32.totalorder %s30, 1
      %p48 = por %p46, %p47
      %p49 = scmp.ne.s32.totalorder %s38, %s39
      %p50 = scmp.eq.s32.totalorder %s30, 0
      %p51 = por %p49, %p50
      %p52 = scmp.ne.s32.totalorder %s38, %s39
      %p53 = scmp.eq.s32.totalorder %s31, 1
      %p54 = por %p52, %p53
      %p56 = scmp.ne.s32.totalorder %s39, %s55
      %p57 = scmp.eq.s32.totalorder %s31, 0
      %p58 = por %p56, %p57
      %s60 = sadd.s32 %s59, 1
      %p63 = scmp.eq.s32.totalorder %s25, 1
      %p64 = scmp.ne.s32.totalorder %s59, %s61
      %p65 = scmp.eq.s32.totalorder %s25, 0
      %p66 = por %p64, %p65
      %p67 = scmp.ne.s32.totalorder %s59, %s61
      %p68 = scmp.eq.s32.totalorder %s30, 1
      %p69 = por %p67, %p68
      %p70 = scmp.ne.s32.totalorder %s61, %s62
      %p71 = scmp.eq.s32.totalorder %s30, 0
      %p72 = por %p70, %p71
      %p73 = scmp.ne.s32.totalorder %s61, %s62
      %p74 = scmp.eq.s32.totalorder %s31, 1
      %p75 = por %p73, %p74
      %p77 = scmp.ne.s32.totalorder %s62, %s76
      %p78 = scmp.eq.s32.totalorder %s31, 0
      %p79 = por %p77, %p78
      %s81 = sadd.s32 %s80, 1
      %p84 = scmp.eq.s32.totalorder %s25, 1
      %p85 = scmp.ne.s32.totalorder %s80, %s82
      %p86 = scmp.eq.s32.totalorder %s25, 0
      %p87 = por %p85, %p86
      %p88 = scmp.ne.s32.totalorder %s80, %s82
      %p89 = scmp.eq.s32.totalorder %s30, 1
      %p90 = por %p88, %p89
      %p91 = scmp.ne.s32.totalorder %s82, %s83
      %p92 = scmp.eq.s32.totalorder %s30, 0
      %p93 = por %p91, %p92
      %p94 = scmp.ne.s32.totalorder %s82, %s83
      %p95 = scmp.eq.s32.totalorder %s31, 1
      %p96 = por %p94, %p95
      %p98 = scmp.ne.s32.totalorder %s83, %s97
      %p99 = scmp.eq.s32.totalorder %s31, 0
      %p100 = por %p98, %p99
      %s102 = sadd.s32 %s101, 1
      %p105 = scmp.eq.s32.totalorder %s25, 1
      %p106 = scmp.ne.s32.totalorder %s101, %s103
      %p107 = scmp.eq.s32.totalorder %s25, 0
      %p108 = por %p106, %p107
      %p109 = scmp.ne.s32.totalorder %s101, %s103
      %p110 = scmp.eq.s32.totalorder %s30, 1
      %p111 = por %p109, %p110
      %p112 = scmp.ne.s32.totalorder %s103, %s104
      %p113 = scmp.eq.s32.totalorder %s30, 0
      %p114 = por %p112, %p113
      %p115 = scmp.ne.s32.totalorder %s103, %s104
      %p116 = scmp.eq.s32.totalorder %s31, 1
      %p117 = por %p115, %p116
      %p119 = scmp.ne.s32.totalorder %s104, %s118
      %p120 = scmp.eq.s32.totalorder %s31, 0
      %p121 = por %p119, %p120
      %s123 = sadd.s32 %s122, 1
      %p126 = scmp.eq.s32.totalorder %s25, 1
      %p127 = scmp.ne.s32.totalorder %s122, %s124
      %p128 = scmp.eq.s32.totalorder %s25, 0
      %p129 = por %p127, %p128
      %p130 = scmp.ne.s32.totalorder %s122, %s124
      %p131 = scmp.eq.s32.totalorder %s30, 1
      %p132 = por %p130, %p131
      %p133 = scmp.ne.s32.totalorder %s124, %s125
      %p134 = scmp.eq.s32.totalorder %s30, 0
      %p135 = por %p133, %p134
      %p136 = scmp.ne.s32.totalorder %s124, %s125
      %p137 = scmp.eq.s32.totalorder %s31, 1
      %p138 = por %p136, %p137
      %p140 = scmp.ne.s32.totalorder %s125, %s139
      %p141 = scmp.eq.s32.totalorder %s31, 0
      %p142 = por %p140, %p141
      %s144 = sadd.s32 %s143, 1
      %p147 = scmp.eq.s32.totalorder %s25, 1
      %p148 = scmp.ne.s32.totalorder %s143, %s145
      %p149 = scmp.eq.s32.totalorder %s25, 0
      %p150 = por %p148, %p149
      %p151 = scmp.ne.s32.totalorder %s143, %s145
      %p152 = scmp.eq.s32.totalorder %s30, 1
      %p153 = por %p151, %p152
      %p154 = scmp.ne.s32.totalorder %s145, %s146
      %p155 = scmp.eq.s32.totalorder %s30, 0
      %p156 = por %p154, %p155
      %p157 = scmp.ne.s32.totalorder %s145, %s146
      %p158 = scmp.eq.s32.totalorder %s31, 1
      %p159 = por %p157, %p158
      %p161 = scmp.ne.s32.totalorder %s146, %s160
      %p162 = scmp.eq.s32.totalorder %s31, 0
      %p163 = por %p161, %p162
      %s165 = sadd.s32 %s164, 1
      %p168 = scmp.eq.s32.totalorder %s25, 1
      %p169 = scmp.ne.s32.totalorder %s164, %s166
      %p170 = scmp.eq.s32.totalorder %s25, 0
      %p171 = por %p169, %p170
      %p172 = scmp.ne.s32.totalorder %s164, %s166
      %p173 = scmp.eq.s32.totalorder %s30, 1
      %p174 = por %p172, %p173
      %p175 = scmp.ne.s32.totalorder %s166, %s167
      %p176 = scmp.eq.s32.totalorder %s30, 0
      %p177 = por %p175, %p176
      %p178 = scmp.ne.s32.totalorder %s166, %s167
      %p179 = scmp.eq.s32.totalorder %s31, 1
      %p180 = por %p178, %p179
      %p182 = scmp.ne.s32.totalorder %s167, %s181
      %p183 = scmp.eq.s32.totalorder %s31, 0
      %p184 = por %p182, %p183
      %s185 = ssub.s32 %s25, %s32
      %p186 = scmp.eq.s32.totalorder %s185, 0
      %s188 = sadd.s32 %s187, 1
      %s189 = scalar_select %p186, %s187, %s188
      %p192 = pneg %p186
      %p193 = scmp.eq.s32.totalorder %s25, 1
      %p194 = por %p192, %p193
      %p195 = scmp.ne.s32.totalorder %s187, %s190
      %p196 = scmp.eq.s32.totalorder %s25, 0
      %p197 = por %p195, %p196
      %p198 = scmp.ne.s32.totalorder %s187, %s190
      %p199 = scmp.eq.s32.totalorder %s30, 1
      %p200 = por %p198, %p199
      %p201 = scmp.ne.s32.totalorder %s190, %s191
      %p202 = scmp.eq.s32.totalorder %s30, 0
      %p203 = por %p201, %p202
      %p204 = scmp.ne.s32.totalorder %s190, %s191
      %p205 = scmp.eq.s32.totalorder %s31, 1
      %p206 = por %p204, %p205
      %p208 = scmp.ne.s32.totalorder %s191, %s207
      %p209 = scmp.eq.s32.totalorder %s31, 0
      %p210 = por %p208, %p209
      %s211 = ssub.s32 %s25, %s32
      %p212 = scmp.eq.s32.totalorder %s211, 0
      %s214 = sadd.s32 %s213, 1
      %s215 = scalar_select %p212, %s213, %s214
      %p218 = pneg %p212
      %p219 = scmp.eq.s32.totalorder %s25, 1
      %p220 = por %p218, %p219
      %p221 = scmp.ne.s32.totalorder %s213, %s216
      %p222 = scmp.eq.s32.totalorder %s25, 0
      %p223 = por %p221, %p222
      %p224 = scmp.ne.s32.totalorder %s213, %s216
      %p225 = scmp.eq.s32.totalorder %s30, 1
      %p226 = por %p224, %p225
      %p227 = scmp.ne.s32.totalorder %s216, %s217
      %p228 = scmp.eq.s32.totalorder %s30, 0
      %p229 = por %p227, %p228
      %p230 = scmp.ne.s32.totalorder %s216, %s217
      %p231 = scmp.eq.s32.totalorder %s31, 1
      %p232 = por %p230, %p231
      %p234 = scmp.ne.s32.totalorder %s217, %s233
      %p235 = scmp.eq.s32.totalorder %s31, 0
      %p236 = por %p234, %p235
      %p237 = scmp.le.s32.totalorder 1, %s25
      %p238 = scmp.lt.s32.totalorder %s25, 3
      %p239 = pnand %p237, %p238
      %p240 = pneg %p239
      // Predicated region
      $region9: #{tpu_custom_call.1} parent=5 // pred_check
        _
      $region10: #{tpu_custom_call.1} parent=5 // pred_check_branch
        %242 = sbr.rel (%p239) target = $region12
      $region11: #{tpu_custom_call.1} parent=5 // pred_region
        %s243 = ssub.s32 %s25, 1
        // Predicated region
        $region13: #{tpu_custom_call.1} parent=11 // pred_check
          %p244 = pneg %p72
        $region14: #{tpu_custom_call.1} parent=11 // pred_check_branch
          %246 = sbr.rel (%p244) target = $region16
        $region15: #{tpu_custom_call.1} parent=11 // pred_region
          _
        $region16: #{tpu_custom_call.1} parent=11 // pred_fallthru
          _
        // Predicated region
        $region17: #{tpu_custom_call.1} parent=11 // pred_check
          %p247 = pneg %p93
        $region18: #{tpu_custom_call.1} parent=11 // pred_check_branch
          %249 = sbr.rel (%p247) target = $region20
        $region19: #{tpu_custom_call.1} parent=11 // pred_region
          _
        $region20: #{tpu_custom_call.1} parent=11 // pred_fallthru
          _
        // Predicated region
        $region21: #{tpu_custom_call.1} parent=11 // pred_check
          %p250 = pneg %p114
        $region22: #{tpu_custom_call.1} parent=11 // pred_check_branch
          %252 = sbr.rel (%p250) target = $region24
        $region23: #{tpu_custom_call.1} parent=11 // pred_region
          %s254 = ssub.s32 512, 512
          %255 = vsyncadd [#allocation6], %s254
          %s256 = sshll.u32 [#allocation5], 4
          %s257 = int_to_ptr.vmem [resolvable:$true] %s256
          %262 = dma.hbm_to_vmem [thread:$0]  %s3, 512, %s257, [#allocation6], 128, 128, 8
        $region24: #{tpu_custom_call.1} parent=11 // pred_fallthru
          _
        // Predicated region
        $region25: #{tpu_custom_call.1} parent=11 // pred_check
          %p263 = pneg %p135
        $region26: #{tpu_custom_call.1} parent=11 // pred_check_branch
          %265 = sbr.rel (%p263) target = $region28
        $region27: #{tpu_custom_call.1} parent=11 // pred_region
          _
        $region28: #{tpu_custom_call.1} parent=11 // pred_fallthru
          _
        // Predicated region
        $region29: #{tpu_custom_call.1} parent=11 // pred_check
          %p266 = pneg %p156
        $region30: #{tpu_custom_call.1} parent=11 // pred_check_branch
          %268 = sbr.rel (%p266) target = $region32
        $region31: #{tpu_custom_call.1} parent=11 // pred_region
          %s270 = ssub.s32 512, 512
          %271 = vsyncadd [#allocation6], %s270
          %s272 = sshll.u32 [#allocation7], 4
          %s273 = int_to_ptr.vmem [resolvable:$true] %s272
          %278 = dma.hbm_to_vmem [thread:$0]  %s5, 512, %s273, [#allocation6], 128, 128, 8
        $region32: #{tpu_custom_call.1} parent=11 // pred_fallthru
          _
        // Predicated region
        $region33: #{tpu_custom_call.1} parent=11 // pred_check
          %p279 = pneg %p177
        $region34: #{tpu_custom_call.1} parent=11 // pred_check_branch
          %281 = sbr.rel (%p279) target = $region36
        $region35: #{tpu_custom_call.1} parent=11 // pred_region
          _
        $region36: #{tpu_custom_call.1} parent=11 // pred_fallthru
          _
      $region12: #{tpu_custom_call.1} parent=5 // pred_fallthru
        _
      %p282 = scmp.lt.s32.totalorder %s25, 2
      // Predicated region
      $region37: #{tpu_custom_call.1} parent=5 // pred_check
        %p283 = pneg %p282
      $region38: #{tpu_custom_call.1} parent=5 // pred_check_branch
        %285 = sbr.rel (%p283) target = $region40
      $region39: #{tpu_custom_call.1} parent=5 // pred_region
        // Predicated region
        $region41: #{tpu_custom_call.1} parent=39 // pred_check
          %p286 = pneg %p45
        $region42: #{tpu_custom_call.1} parent=39 // pred_check_branch
          %288 = sbr.rel (%p286) target = $region44
        $region43: #{tpu_custom_call.1} parent=39 // pred_region
          %s289 = sand.u32 %s35, 1
          %s290 = scalar_lea.sflag [#allocation3], %s289
          %s291 = sand.u32 %s35, 1
          %s292 = smul.addr %s291, 8
          %s293 = scalar_lea.vmem [#allocation2], %s292
          %s295 = ssub.s32 128, 128
          %296 = vsyncadd %s290, %s295
          %s297 = smul.addr %s25, 128
          %s298 = scalar_lea.hbm %s0, %s297
          %s300 = sshll.u32 %s293, 4
          %s301 = int_to_ptr.vmem [resolvable:$true] %s300
          %303 = dma.hbm_to_vmem [thread:$0]  %s298, 128, %s301, %s290
        $region44: #{tpu_custom_call.1} parent=39 // pred_fallthru
          _
      $region40: #{tpu_custom_call.1} parent=5 // pred_fallthru
        _
      %p304 = scmp.le.s32.totalorder 1, %s25
      %p305 = scmp.lt.s32.totalorder %s25, 3
      %p306 = pnand %p304, %p305
      %p307 = pneg %p306
      // Predicated region
      $region45: #{tpu_custom_call.1} parent=5 // pred_check
        _
      $region46: #{tpu_custom_call.1} parent=5 // pred_check_branch
        %309 = sbr.rel (%p306) target = $region48
      $region47: #{tpu_custom_call.1} parent=5 // pred_region
        %s310 = ssub.s32 %s25, 1
        %s311 = sand.u32 %s38, 1
        %s312 = scalar_lea.sflag [#allocation3], %s311
        %s313 = sand.u32 %s38, 1
        %s314 = smul.addr %s313, 8
        %s315 = scalar_lea.vmem [#allocation2], %s314
        // Predicated region
        $region49: #{tpu_custom_call.1} parent=47 // pred_check
          %p316 = pneg %p51
        $region50: #{tpu_custom_call.1} parent=47 // pred_check_branch
          %318 = sbr.rel (%p316) target = $region52
        $region51: #{tpu_custom_call.1} parent=47 // pred_region
          %319 = dma.done %s312, 128
        $region52: #{tpu_custom_call.1} parent=47 // pred_fallthru
          _
        // Predicated region
        $region53: #{tpu_custom_call.1} parent=47 // pred_check
          %p320 = pneg %p114
        $region54: #{tpu_custom_call.1} parent=47 // pred_check_branch
          %322 = sbr.rel (%p320) target = $region56
        $region55: #{tpu_custom_call.1} parent=47 // pred_region
          %323 = dma.done [#allocation6], 512
        $region56: #{tpu_custom_call.1} parent=47 // pred_fallthru
          _
        // Predicated region
        $region57: #{tpu_custom_call.1} parent=47 // pred_check
          %p324 = pneg %p156
        $region58: #{tpu_custom_call.1} parent=47 // pred_check_branch
          %326 = sbr.rel (%p324) target = $region60
        $region59: #{tpu_custom_call.1} parent=47 // pred_region
          %327 = dma.done [#allocation6], 512
        $region60: #{tpu_custom_call.1} parent=47 // pred_fallthru
          _
        %s328 = sand.u32 %s38, 1
        %s329 = scalar_lea.sflag [#allocation3], %s328
        %s330 = sand.u32 %s38, 1
        %s331 = smul.addr %s330, 8
        %s332 = scalar_lea.vmem [#allocation2], %s331
        %p333 = pneg %p51
        %p334 = pneg %p48
        %p335 = pneg %p72
        %p336 = pneg %p69
        %p337 = pneg %p93
        %p338 = pneg %p90
        %p339 = pneg %p114
        %p340 = pneg %p111
        %p341 = pneg %p135
        %p342 = pneg %p132
        %p343 = pneg %p156
        %p344 = pneg %p153
        %p345 = pneg %p177
        %p346 = pneg %p174
        %p347 = pneg %p203
        %p348 = pneg %p200
        %s349 = sand.u32 %s190, 1
        %s350 = scalar_lea.sflag [#allocation4], %s349
        %s351 = sand.u32 %s190, 1
        %s352 = smul.addr %s351, 16
        %s353 = scalar_lea.vmem [#allocation8], %s352
        %p354 = pneg %p229
        %p355 = pneg %p226
        %s356 = sand.u32 %s216, 1
        %s357 = scalar_lea.sflag [#allocation10], %s356
        %s358 = sand.u32 %s216, 1
        %s359 = smul.addr %s358, 16
        %s360 = scalar_lea.vmem [#allocation9], %s359
        %v361 = vld [vmem:[%s315] sm:$0xff]
        %vm362 = vcmask 261120
        %v363 = vsel %vm362, %v361, 0.0
        %364 = vadd.xlane.f32.xlu0 %v363
        %v365 = vpop.xlane.xlu0 %364
        %v366 = vrcp.pop 32.0
        %v367 = vmul.f32 %v365, %v366
        %v368 = vsub.f32 %v361, %v367
        %v369 = vmul.f32 %v368, %v368
        %v370 = vsel %vm362, %v369, 0.0
        %371 = vadd.xlane.f32.xlu0 %v370
        %v372 = vpop.xlane.xlu0 %371
        %v373 = vmul.f32 %v372, %v366
        %v374 = vadd.f32 %v373, 1e-05
        %v375 = vrsqrt.pop %v374
        %v376 = vmul.f32 %v368, %v375
        %v377 = vld [vmem:[%s1] sm:$0x1]
        %v379 = vlaneseq
        %v380 = vshrl.u32 %v379, 7
        %v381 = vsub.s32 0, %v380
        %v382 = vrot.slane %v377, %v381
        %v384 = vmul.f32 %v376, %v382
        %v385 = vld [vmem:[%s2] sm:$0x1]
        %v387 = vlaneseq
        %v388 = vshrl.u32 %v387, 7
        %v389 = vsub.s32 0, %v388
        %v390 = vrot.slane %v385, %v389
        %v392 = vadd.f32 %v384, %v390
        %v393 = vld [vmem:[#allocation5] sm:$0xff]
        %v394 = vld [vmem:[#allocation5 + $0x8] sm:$0xff]
        %v395 = vld [vmem:[#allocation5 + $0x10] sm:$0xff]
        %v396 = vld [vmem:[#allocation5 + $0x18] sm:$0xff]
        %v397 = vld [vmem:[%s4] sm:$0x1]
        %v399 = vlaneseq
        %v400 = vshrl.u32 %v399, 7
        %v401 = vsub.s32 0, %v400
        %v402 = vrot.slane %v397, %v401
        %v405 = vsel %vm362, %v392, 0
        %407 = vmatprep.subr.mxu0 0.0
        %408 = vmatpush1.msra.mxu0 %v393
        %409 = vmatprep.subr.mxu0 0.0
        %410 = vmatpush1.msra.mxu0 %v394
        %411 = vmatprep.subr.mxu0 0.0
        %412 = vmatpush1.msra.mxu0 %v395
        %413 = vmatprep.subr.mxu0 0.0
        %414 = vmatpush1.msra.mxu0 %v396
        %415 = vmatprep.subr.mxu0 0.0
        %416 = vmatpush1.msra.mxu0 0.0
        %417 = vmatprep.subr.mxu0 0.0
        %418 = vmatpush1.msra.mxu0 0.0
        %419 = vmatprep.subr.mxu0 0.0
        %420 = vmatpush1.msra.mxu0 0.0
        %421 = vmatprep.subr.mxu0 0.0
        %422 = vmatpush1.msra.mxu0 0.0
        %423 = vmatprep.subr.mxu0 0.0
        %424 = vmatpush1.msra.mxu0 0.0
        %425 = vmatprep.subr.mxu0 0.0
        %426 = vmatpush1.msra.mxu0 0.0
        %427 = vmatprep.subr.mxu0 0.0
        %428 = vmatpush1.msra.mxu0 0.0
        %429 = vmatprep.subr.mxu0 0.0
        %430 = vmatpush1.msra.mxu0 0.0
        %431 = vmatprep.subr.mxu0 0.0
        %432 = vmatpush1.msra.mxu0 0.0
        %433 = vmatprep.subr.mxu0 0.0
        %434 = vmatpush1.msra.mxu0 0.0
        %435 = vmatprep.subr.mxu0 0.0
        %436 = vmatpush1.msra.mxu0 0.0
        %437 = vmatprep.subr.mxu0 0.0
        %438 = vmatpush1.msra.mxu0 0.0
        %439 = vmatprep.subr.mxu0 0.0
        %440 = vmatpush1.msra.mxu0 0.0
        %441 = vmatprep.subr.mxu0 0.0
        %442 = vmatpush1.msra.mxu0 0.0
        %443 = vmatprep.subr.mxu0 0.0
        %444 = vmatpush1.msra.mxu0 0.0
        %445 = vmatprep.subr.mxu0 0.0
        %446 = vmatpush1.msra.mxu0 0.0
        %447 = vmatprep.subr.mxu0 0.0
        %448 = vmatpush1.msra.mxu0 0.0
        %449 = vmatprep.subr.mxu0 0.0
        %450 = vmatpush1.msra.mxu0 0.0
        %451 = vmatprep.subr.mxu0 0.0
        %452 = vmatpush1.msra.mxu0 0.0
        %453 = vmatprep.subr.mxu0 0.0
        %454 = vmatpush1.msra.mxu0 0.0
        %455 = vmatprep.subr.mxu0 0.0
        %456 = vmatpush1.msra.mxu0 0.0
        %457 = vmatprep.subr.mxu0 0.0
        %458 = vmatpush1.msra.mxu0 0.0
        %459 = vmatprep.subr.mxu0 0.0
        %460 = vmatpush1.msra.mxu0 0.0
        %461 = vmatprep.subr.mxu0 0.0
        %462 = vmatpush1.msra.mxu0 0.0
        %463 = vmatprep.subr.mxu0 0.0
        %464 = vmatpush1.msra.mxu0 0.0
        %465 = vmatprep.subr.mxu0 0.0
        %466 = vmatpush1.msra.mxu0 0.0
        %467 = vmatprep.subr.mxu0 0.0
        %468 = vmatpush1.msra.mxu0 0.0
        %469 = vmatprep.subr.mxu0 0.0
        %470 = vmatpush1.msra.mxu0 0.0
        %471 = vmatprep.mubr.f32.mxu0 0.0
        %472 = vmatmul.mubr.f32.gmra.mrb[0].mxu0 %v405
        %v473 = vpop.f32.mrb[0].mxu0
        %v474 = vadd.f32 %v402, %v473
        %v475 = vpop.f32.mrb[0].mxu0
        %476 = vdwg.mxu0
        %v477 = vld [vmem:[#allocation7] sm:$0xff]
        %v478 = vld [vmem:[#allocation7 + $0x8] sm:$0xff]
        %v479 = vld [vmem:[#allocation7 + $0x10] sm:$0xff]
        %v480 = vld [vmem:[#allocation7 + $0x18] sm:$0xff]
        %v481 = vld [vmem:[%s6] sm:$0x1]
        %v483 = vlaneseq
        %v484 = vshrl.u32 %v483, 7
        %v485 = vsub.s32 0, %v484
        %v486 = vrot.slane %v481, %v485
        %488 = vmatprep.subr.mxu0 0.0
        %489 = vmatpush1.msra.mxu0 %v477
        %490 = vmatprep.subr.mxu0 0.0
        %491 = vmatpush1.msra.mxu0 %v478
        %492 = vmatprep.subr.mxu0 0.0
        %493 = vmatpush1.msra.mxu0 %v479
        %494 = vmatprep.subr.mxu0 0.0
        %495 = vmatpush1.msra.mxu0 %v480
        %496 = vmatprep.subr.mxu0 0.0
        %497 = vmatpush1.msra.mxu0 0.0
        %498 = vmatprep.subr.mxu0 0.0
        %499 = vmatpush1.msra.mxu0 0.0
        %500 = vmatprep.subr.mxu0 0.0
        %501 = vmatpush1.msra.mxu0 0.0
        %502 = vmatprep.subr.mxu0 0.0
        %503 = vmatpush1.msra.mxu0 0.0
        %504 = vmatprep.subr.mxu0 0.0
        %505 = vmatpush1.msra.mxu0 0.0
        %506 = vmatprep.subr.mxu0 0.0
        %507 = vmatpush1.msra.mxu0 0.0
        %508 = vmatprep.subr.mxu0 0.0
        %509 = vmatpush1.msra.mxu0 0.0
        %510 = vmatprep.subr.mxu0 0.0
        %511 = vmatpush1.msra.mxu0 0.0
        %512 = vmatprep.subr.mxu0 0.0
        %513 = vmatpush1.msra.mxu0 0.0
        %514 = vmatprep.subr.mxu0 0.0
        %515 = vmatpush1.msra.mxu0 0.0
        %516 = vmatprep.subr.mxu0 0.0
        %517 = vmatpush1.msra.mxu0 0.0
        %518 = vmatprep.subr.mxu0 0.0
        %519 = vmatpush1.msra.mxu0 0.0
        %520 = vmatprep.subr.mxu0 0.0
        %521 = vmatpush1.msra.mxu0 0.0
        %522 = vmatprep.subr.mxu0 0.0
        %523 = vmatpush1.msra.mxu0 0.0
        %524 = vmatprep.subr.mxu0 0.0
        %525 = vmatpush1.msra.mxu0 0.0
        %526 = vmatprep.subr.mxu0 0.0
        %527 = vmatpush1.msra.mxu0 0.0
        %528 = vmatprep.subr.mxu0 0.0
        %529 = vmatpush1.msra.mxu0 0.0
        %530 = vmatprep.subr.mxu0 0.0
        %531 = vmatpush1.msra.mxu0 0.0
        %532 = vmatprep.subr.mxu0 0.0
        %533 = vmatpush1.msra.mxu0 0.0
        %534 = vmatprep.subr.mxu0 0.0
        %535 = vmatpush1.msra.mxu0 0.0
        %536 = vmatprep.subr.mxu0 0.0
        %537 = vmatpush1.msra.mxu0 0.0
        %538 = vmatprep.subr.mxu0 0.0
        %539 = vmatpush1.msra.mxu0 0.0
        %540 = vmatprep.subr.mxu0 0.0
        %541 = vmatpush1.msra.mxu0 0.0
        %542 = vmatprep.subr.mxu0 0.0
        %543 = vmatpush1.msra.mxu0 0.0
        %544 = vmatprep.subr.mxu0 0.0
        %545 = vmatpush1.msra.mxu0 0.0
        %546 = vmatprep.subr.mxu0 0.0
        %547 = vmatpush1.msra.mxu0 0.0
        %548 = vmatprep.subr.mxu0 0.0
        %549 = vmatpush1.msra.mxu0 0.0
        %550 = vmatprep.subr.mxu0 0.0
        %551 = vmatpush1.msra.mxu0 0.0
        %552 = vmatprep.mubr.f32.mxu0 0.0
        %553 = vmatmul.mubr.f32.gmra.mrb[0].mxu0 %v405
        %v554 = vpop.f32.mrb[0].mxu0
        %v555 = vadd.f32 %v486, %v554
        %v556 = vpop.f32.mrb[0].mxu0
        %557 = vdwg.mxu0
        %vm558 = vcmask 130048
        %559 = vst.msk [vmem:[%s353] sm:$0xff] %vm558, %v474
        %560 = vst.msk [vmem:[%s360] sm:$0xff] %vm558, %v555
        %562 = vrot.lane.b32.xlu0 %v474, 112
        %v563 = vpop.permute.xlu0 %562
        %s565 = scalar_lea.vmem %s353, 8 [#allocation8]
        %566 = vst.msk [vmem:[%s565] sm:$0xff] %vm558, %v563
        %568 = vrot.lane.b32.xlu0 %v555, 112
        %v569 = vpop.permute.xlu0 %568
        %s571 = scalar_lea.vmem %s360, 8 [#allocation9]
        %572 = vst.msk [vmem:[%s571] sm:$0xff] %vm558, %v569
        %s573 = sand.u32 %s190, 1
        %s574 = scalar_lea.sflag [#allocation4], %s573
        %s575 = sand.u32 %s190, 1
        %s576 = smul.addr %s575, 16
        %s577 = scalar_lea.vmem [#allocation8], %s576
        %s578 = sand.u32 %s216, 1
        %s579 = scalar_lea.sflag [#allocation10], %s578
        %s580 = sand.u32 %s216, 1
        %s581 = smul.addr %s580, 16
        %s582 = scalar_lea.vmem [#allocation9], %s581
        // Predicated region
        $region61: #{tpu_custom_call.1} parent=47 // pred_check
          %p583 = pneg %p200
        $region62: #{tpu_custom_call.1} parent=47 // pred_check_branch
          %585 = sbr.rel (%p583) target = $region64
        $region63: #{tpu_custom_call.1} parent=47 // pred_region
          %s587 = ssub.s32 256, 256
          %588 = vsyncadd %s574, %s587
          %s589 = smul.addr %s30, 2
          %s590 = smul.addr %s589, 128
          %s591 = scalar_lea.hbm %s7, %s590
          %s592 = sshll.u32 %s577, 4
          %s593 = int_to_ptr.vmem [resolvable:$true] %s592
          %598 = dma.vmem_to_hbm [thread:$0]  %s593, 256, %s591, %s574, 128, 128, 8
        $region64: #{tpu_custom_call.1} parent=47 // pred_fallthru
          _
        // Predicated region
        $region65: #{tpu_custom_call.1} parent=47 // pred_check
          %p599 = pneg %p226
        $region66: #{tpu_custom_call.1} parent=47 // pred_check_branch
          %601 = sbr.rel (%p599) target = $region68
        $region67: #{tpu_custom_call.1} parent=47 // pred_region
          %s603 = ssub.s32 256, 256
          %604 = vsyncadd %s579, %s603
          %s605 = smul.addr %s30, 2
          %s606 = smul.addr %s605, 128
          %s607 = scalar_lea.hbm %s8, %s606
          %s608 = sshll.u32 %s582, 4
          %s609 = int_to_ptr.vmem [resolvable:$true] %s608
          %614 = dma.vmem_to_hbm [thread:$0]  %s609, 256, %s607, %s579, 128, 128, 8
        $region68: #{tpu_custom_call.1} parent=47 // pred_fallthru
          _
      $region48: #{tpu_custom_call.1} parent=5 // pred_fallthru
        _
      %p615 = scmp.le.s32.totalorder 2, %s25
      // Predicated region
      $region69: #{tpu_custom_call.1} parent=5 // pred_check
        %p616 = pneg %p615
      $region70: #{tpu_custom_call.1} parent=5 // pred_check_branch
        %618 = sbr.rel (%p616) target = $region72
      $region71: #{tpu_custom_call.1} parent=5 // pred_region
        %s619 = ssub.s32 %s25, 2
        // Predicated region
        $region73: #{tpu_custom_call.1} parent=71 // pred_check
          %p620 = pneg %p206
        $region74: #{tpu_custom_call.1} parent=71 // pred_check_branch
          %622 = sbr.rel (%p620) target = $region76
        $region75: #{tpu_custom_call.1} parent=71 // pred_region
          %s623 = sand.u32 %s191, 1
          %s624 = scalar_lea.sflag [#allocation4], %s623
          %s625 = sand.u32 %s191, 1
          %s626 = smul.addr %s625, 16
          %s627 = scalar_lea.vmem [#allocation8], %s626
          %628 = dma.done %s624, 256
        $region76: #{tpu_custom_call.1} parent=71 // pred_fallthru
          _
        // Predicated region
        $region77: #{tpu_custom_call.1} parent=71 // pred_check
          %p629 = pneg %p232
        $region78: #{tpu_custom_call.1} parent=71 // pred_check_branch
          %631 = sbr.rel (%p629) target = $region80
        $region79: #{tpu_custom_call.1} parent=71 // pred_region
          %s632 = sand.u32 %s217, 1
          %s633 = scalar_lea.sflag [#allocation10], %s632
          %s634 = sand.u32 %s217, 1
          %s635 = smul.addr %s634, 16
          %s636 = scalar_lea.vmem [#allocation9], %s635
          %637 = dma.done %s633, 256
        $region80: #{tpu_custom_call.1} parent=71 // pred_fallthru
          _
      $region72: #{tpu_custom_call.1} parent=5 // pred_fallthru
        _
    $region6: #{tpu_custom_call.1} parent=1 // loop_footer
      %s29 = sadd.s32 1, %s25
    $region7: #{tpu_custom_call.1} parent=1 // loop_footer_branch
      %24 = sbr.rel target = $region3
    $region8: #{tpu_custom_call.1} parent=1 // loop_exit
      _
    %638 = vsyncpa [#allocation3], 1
    %s639 = scalar_lea.sflag [#allocation3], 1
    %640 = vsyncpa %s639, 1
    %641 = vsyncpa [#allocation6], 1
    %642 = vsyncpa [#allocation4], 1
    %s643 = scalar_lea.sflag [#allocation4], 1
    %644 = vsyncpa %s643, 1
    %645 = vsyncpa [#allocation10], 1
    %s646 = scalar_lea.sflag [#allocation10], 1
    %647 = vsyncpa %s646, 1

</llo_original>
